<compile_context>
chip_gen: v7x
topology: tpu7x:2x2x1
jax: 0.10.0
libtpu: 0.0.40
codegen_flags: <defaults>
</compile_context>

<pallas_src>
import math
from functools import partial

import jax
import jax.numpy as jnp
from jax.experimental import pallas as pl
from jax.experimental.pallas import tpu as pltpu


_TARGET_BLOCK_BYTES = 6 * 1024 * 1024      # per x block; ~36 MiB double-buffered worst case
_VMEM_LIMIT_BYTES = 48 * 1024 * 1024       # < 64 MiB (v7x per-TC physical), << 128 MiB (v5e/v6e)
_MIN_DENSE_ROW_BYTES = 512                 # below this, strided per-batch DMA rows are too short


# ---------------------------------------------------------------------------
# Kernels
# ---------------------------------------------------------------------------

def _add_pe_2d_kernel(x_ref, pe_ref, o_ref):
    # x_ref / pe_ref / o_ref: (ts, D) -- plain lane/sublane-dense elementwise add.
    o_ref[...] = x_ref[...] + pe_ref[...]


def _add_pe_3d_bcast_kernel(x_ref, pe_ref, o_ref):
    # x_ref: (ts, B, D), pe_ref: (ts, D) -> broadcast over batch inside vregs.
    o_ref[...] = x_ref[...] + pe_ref[...][:, None, :]


# ---------------------------------------------------------------------------
# Helpers
# ---------------------------------------------------------------------------

def _round_up(n: int, m: int) -> int:
    return -(-n // m) * m


def _sublane_pack(dtype) -> int:
    """Rows per packed sublane register: 8 for 4-byte, 16 for 2-byte, 32 for 1-byte."""
    return max(8, 32 // jnp.dtype(dtype).itemsize)


def _choose_tile_rows(S: int, block_row_bytes: int, dtype) -> int:
    """Rows of S per block: ~_TARGET_BLOCK_BYTES, sublane-pack aligned, >=2 grid steps."""
    pack = _sublane_pack(dtype)
    if S <= pack:
        return S
    rows = _TARGET_BLOCK_BYTES // max(1, block_row_bytes)
    rows = min(rows, S)
    rows = max(pack, (rows // pack) * pack)
    if pl.cdiv(S, rows) < 2:
        # Keep at least two S tiles so a multi-TensorCore part (v7x) can split the grid;
        # a no-op cost on single-TC v5e/v6e for these block sizes.
        rows = max(pack, _round_up(-(-S // 2), pack))
    return min(rows, S)


def _prepare_pe(pe_full, S: int, D: int, dtype, ts: int):
    """Return the PE operand for pallas_call, unsliced whenever legal (no extra HBM pass)."""
    max_len, d_model = pe_full.shape
    if D == d_model and jnp.dtype(dtype) == pe_full.dtype and ts % 8 == 0:
        # BlockSpec ((ts, D), lambda ...: (i, 0)) only reads the first cdiv(S, ts)
        # row-blocks of the full (max_len, d_model) buffer; ts%8==0 and D==d_model
        # satisfy the (8, 128)/full-extent tiling rule.
        return pe_full
    # Rare fallback (feature slice / dtype cast / tiny non-multiple-of-8 tile).
    return pe_full[:S, :D].astype(dtype)


def make_pe_buffer(d_model: int, max_len: int = 5000, dtype=jnp.float32):
    """Deterministic sinusoidal PE buffer (max_len, d_model), matching PyTorch."""
    position = jnp.arange(max_len, dtype=jnp.float32)[:, None]                  # (max_len, 1)
    div_term = jnp.exp(
        jnp.arange(0, d_model, 2, dtype=jnp.float32) * (-math.log(10000.0) / d_model)
    )                                                                            # (ceil(D/2),)
    angles = position * div_term                                                 # (max_len, ceil(D/2))
    pe = jnp.zeros((max_len, d_model), dtype=jnp.float32)
    pe = pe.at[:, 0::2].set(jnp.sin(angles))
    # Odd d_model: the PyTorch original raises on the cos assignment; we truncate instead.
    pe = pe.at[:, 1::2].set(jnp.cos(angles[:, : d_model // 2]))
    return pe.astype(dtype)


# ---------------------------------------------------------------------------
# pallas_call wrappers
# ---------------------------------------------------------------------------

def _pe_add_3d(x, pe_full, *, block_rows=None, alias=False):
    S, B, D = x.shape
    max_len, d_model = pe_full.shape
    if S > max_len:
        raise ValueError(f"sequence length {S} exceeds max_len {max_len}")
    if D > d_model:
        raise ValueError(f"feature dim {D} exceeds d_model {d_model}")

    use_squeezed = (B == 1) or (D * x.dtype.itemsize >= _MIN_DENSE_ROW_BYTES)
    block_row_bytes = (D if use_squeezed else B * D) * x.dtype.itemsize
    ts = block_rows if block_rows is not None else _choose_tile_rows(S, block_row_bytes, x.dtype)
    ts = min(int(ts), S)
    pe = _prepare_pe(pe_full, S, D, x.dtype, ts)
    aliases = {0: 0} if alias else {}

    if use_squeezed:
        # grid (S tiles, batch); each block is a dense (ts, D) slab of one batch element.
        return pl.pallas_call(
            _add_pe_2d_kernel,
            out_shape=jax.ShapeDtypeStruct((S, B, D), x.dtype),
            grid=(pl.cdiv(S, ts), B),
            in_specs=[
                pl.BlockSpec((ts, pl.Squeezed(), D), lambda i, b: (i, b, 0)),
                pl.BlockSpec((ts, D), lambda i, b: (i, 0)),     # constant across b -> one DMA per S tile
            ],
            out_specs=pl.BlockSpec((ts, pl.Squeezed(), D), lambda i, b: (i, b, 0)),
            input_output_aliases=aliases,
            compiler_params=pltpu.CompilerParams(
                dimension_semantics=(pltpu.PARALLEL, pltpu.ARBITRARY),
                vmem_limit_bytes=_VMEM_LIMIT_BYTES),
        )(x, pe)

    # Small-D layout: contiguous (ts, B, D) blocks, PE broadcast over batch in-kernel.
    return pl.pallas_call(
        _add_pe_3d_bcast_kernel,
        out_shape=jax.ShapeDtypeStruct((S, B, D), x.dtype),
        grid=(pl.cdiv(S, ts),),
        in_specs=[
            pl.BlockSpec((ts, B, D), lambda i: (i, 0, 0)),
            pl.BlockSpec((ts, D), lambda i: (i, 0)),
        ],
        out_specs=pl.BlockSpec((ts, B, D), lambda i: (i, 0, 0)),
        input_output_aliases=aliases,
        compiler_params=pltpu.CompilerParams(
            dimension_semantics=(pltpu.PARALLEL,),
            vmem_limit_bytes=_VMEM_LIMIT_BYTES),
    )(x, pe)


def _pe_add_2d(x, pe_full, *, block_rows=None, alias=False):
    S, D = x.shape
    max_len, d_model = pe_full.shape
    if S > max_len:
        raise ValueError(f"sequence length {S} exceeds max_len {max_len}")
    if D > d_model:
        raise ValueError(f"feature dim {D} exceeds d_model {d_model}")

    ts = block_rows if block_rows is not None else _choose_tile_rows(
        S, D * x.dtype.itemsize, x.dtype)
    ts = min(int(ts), S)
    pe = _prepare_pe(pe_full, S, D, x.dtype, ts)
    return pl.pallas_call(
        _add_pe_2d_kernel,
        out_shape=jax.ShapeDtypeStruct((S, D), x.dtype),
        grid=(pl.cdiv(S, ts),),
        in_specs=[
            pl.BlockSpec((ts, D), lambda i: (i, 0)),
            pl.BlockSpec((ts, D), lambda i: (i, 0)),
        ],
        out_specs=pl.BlockSpec((ts, D), lambda i: (i, 0)),
        input_output_aliases={0: 0} if alias else {},
        compiler_params=pltpu.CompilerParams(
            dimension_semantics=(pltpu.PARALLEL,),
            vmem_limit_bytes=_VMEM_LIMIT_BYTES),
    )(x, pe)


# ---------------------------------------------------------------------------
# Module
# ---------------------------------------------------------------------------

class PositionalEncoding:
    """JAX/Pallas port of the PyTorch PositionalEncoding module (seq-first inputs)."""

    def __init__(self, d_model: int, max_len: int = 5000, dtype=jnp.float32,
                 alias_input: bool = False):
        self.d_model = d_model
        self.max_len = max_len
        # Stored in the model dtype so the hot path passes it to the kernel as-is.
        self.pe2d = make_pe_buffer(d_model, max_len, dtype)        # (max_len, d_model)
        # PyTorch buffer shape (max_len, 1, d_model) kept for API compatibility.
        self.pe = self.pe2d[:, None, :]
        # Aliasing is only profitable with buffer donation; callers setting
        # alias_input=True must not reuse x after the call.
        donate = (0,) if alias_input else ()
        self._fwd3 = jax.jit(partial(_pe_add_3d, alias=alias_input),
                             static_argnames=("block_rows",), donate_argnums=donate)
        self._fwd2 = jax.jit(partial(_pe_add_2d, alias=alias_input),
                             static_argnames=("block_rows",), donate_argnums=donate)

    def __call__(self, x: jnp.ndarray, *, block_rows=None) -> jnp.ndarray:
        if x.ndim == 2:
            return self._fwd2(x, self.pe2d, block_rows=block_rows)
        if x.ndim == 3:
            return self._fwd3(x, self.pe2d, block_rows=block_rows)
        raise ValueError(f"expected 2-D or 3-D input, got ndim={x.ndim}")


# ---------------------------------------------------------------------------
# Demo / self-test
# ---------------------------------------------------------------------------

if __name__ == "__main__":
    key = jax.random.PRNGKey(0)
    k1, k2, k3, k4 = jax.random.split(key, 4)

    # Small-D module (D=32 < 128: correct, lane-underfilled; see module docstring).
    mod32 = PositionalEncoding(d_model=32, max_len=128)
    x3 = jax.random.normal(k1, (8, 2, 32), dtype=jnp.float32)    # 3-D, broadcast layout
    x2 = jax.random.normal(k2, (8, 32), dtype=jnp.float32)       # 2-D path
    xt = jax.random.normal(k3, (20, 2, 32), dtype=jnp.float32)   # multi-tile, partial last block

    # Lane-dense module (D=128): exercises the squeezed-batch 3-D layout (grid over S and B).
    mod128 = PositionalEncoding(d_model=128, max_len=64)
    x4 = jax.random.normal(k4, (16, 4, 128), dtype=jnp.float32)

    y3 = jax.block_until_ready(mod32(x3))
    y2 = jax.block_until_ready(mod32(x2))
    yt = jax.block_until_ready(mod32(xt, block_rows=8))          # grid=3, last block partial
    y4 = jax.block_until_ready(mod128(x4))

    ref3 = x3 + mod32.pe[:8, :, :32]
    ref2 = x2 + mod32.pe2d[:8, :32]
    reft = xt + mod32.pe[:20, :, :32]
    ref4 = x4 + mod128.pe[:16, :, :128]

    assert y3.shape == x3.shape and y3.dtype == x3.dtype
    assert y2.shape == x2.shape and y2.dtype == x2.dtype
    assert yt.shape == xt.shape and yt.dtype == xt.dtype
    assert y4.shape == x4.shape and y4.dtype == x4.dtype
    assert jnp.allclose(y3, ref3, atol=1e-6)
    assert jnp.allclose(y2, ref2, atol=1e-6)
    assert jnp.allclose(yt, reft, atol=1e-6)
    assert jnp.allclose(y4, ref4, atol=1e-6)

    print("KERNEL_OK")
</pallas_src>

<mosaic_0001>
module attributes {stable_mosaic.version = 11 : i64} {
  func.func @_add_pe_3d_bcast_kernel(%arg0: i32, %arg1: memref<8x2x32xf32, #tpu.memory_space<vmem>>, %arg2: memref<8x32xf32, #tpu.memory_space<vmem>>, %arg3: memref<8x2x32xf32, #tpu.memory_space<vmem>>) attributes {dimension_semantics = [#tpu.dimension_semantics<parallel>], iteration_bounds = array<i64: 1>, scalar_prefetch = 0 : i64, scratch_operands = 0 : i64, tpu.core_type = #tpu.core_type<tc>, window_params = [{transform_indices = @transform_0, window_bounds = array<i64: 8, 2, 32>}, {transform_indices = @transform_1, window_bounds = array<i64: 8, 32>}, {transform_indices = @transform_2, window_bounds = array<i64: 8, 2, 32>}]} {
    %c0 = arith.constant 0 : index
    %c0_0 = arith.constant 0 : index
    %c0_1 = arith.constant 0 : index
    %0 = vector.load %arg1[%c0, %c0_0, %c0_1] : memref<8x2x32xf32, #tpu.memory_space<vmem>>, vector<8x2x32xf32>
    %c0_2 = arith.constant 0 : index
    %c0_3 = arith.constant 0 : index
    %1 = vector.load %arg2[%c0_2, %c0_3] : memref<8x32xf32, #tpu.memory_space<vmem>>, vector<8x32xf32>
    %2 = vector.shape_cast %1 : vector<8x32xf32> to vector<8x1x32xf32>
    %3 = vector.broadcast %2 : vector<8x1x32xf32> to vector<8x2x32xf32>
    %4 = arith.addf %0, %3 : vector<8x2x32xf32>
    %c0_4 = arith.constant 0 : index
    %c0_5 = arith.constant 0 : index
    %c0_6 = arith.constant 0 : index
    %5 = vector.load %arg3[%c0_4, %c0_5, %c0_6] : memref<8x2x32xf32, #tpu.memory_space<vmem>>, vector<8x2x32xf32>
    tpu.vector_store %arg3[%c0_4, %c0_5, %c0_6], %4 {strides = array<i32>} : memref<8x2x32xf32, #tpu.memory_space<vmem>>, vector<8x2x32xf32>,
    return
  }
  func.func @transform_0(%arg0: i32) -> (i32, i32, i32) {
    %c0_i32 = arith.constant 0 : i32
    %c0_i32_0 = arith.constant 0 : i32
    %c0_i32_1 = arith.constant 0 : i32
    return %arg0, %c0_i32, %c0_i32_0 : i32, i32, i32
  }
  func.func @transform_1(%arg0: i32) -> (i32, i32) {
    %c0_i32 = arith.constant 0 : i32
    %c0_i32_0 = arith.constant 0 : i32
    return %arg0, %c0_i32 : i32, i32
  }
  func.func @transform_2(%arg0: i32) -> (i32, i32, i32) {
    %c0_i32 = arith.constant 0 : i32
    %c0_i32_0 = arith.constant 0 : i32
    %c0_i32_1 = arith.constant 0 : i32
    return %arg0, %c0_i32, %c0_i32_0 : i32, i32, i32
  }
}

</mosaic_0001>

<llo_original>
// kernel: _pe_add_3d.1
$region0: #{_pe_add_3d.1}
  #allocation0 [shape = 'u32[]', space=smem, size = 0x4, offset = 0x4, fixed_abs, tag = 'smem constant byte address 0x4 - core index']
  #allocation1 [shape = 'u32[144,128]{1,0:T(1,128)}', space=vmem, size = 0x12000, scoped, tag = 'internal scratch']
  %s0 = inlined_call_operand.vmem [shape: f32[8,2,32], index: 0, kind: input, shape index: {}]
  %s1 = inlined_call_operand.vmem [shape: f32[128,32], index: 1, kind: input, shape index: {}]
  %s2 = inlined_call_operand.hbm [shape: f32[8,2,32], index: 2, kind: output, shape index: {}]
  %s3 = sld [smem:[#allocation0]]
  $region18: #{_pe_add_3d.1} parent=0
    _
  %s5 = ssub.s32 1, %s3
  %s6 = scalar_select 0, %s5, %s3
  $region1: #{_pe_add_3d.1} parent=0
    #allocation2 [shape = 'u8[8192]{0}', space=vmem, size = 0x2000, scoped, tag = 'output window, operand 0, single buffered']
    #allocation3 [shape = 's32[1]{0}', space=sflag, size = 0x4, scoped, tag = 'scoped memory for _pe_add_3d.1']
    %7 = vsyncpa [#allocation3], 0
    // Predicated region
    $region2: #{_pe_add_3d.1} parent=1 // pred_check
      _
    $region3: #{_pe_add_3d.1} parent=1 // pred_check_branch
      %9 = sbr.rel (0) target = $region5
    $region4: #{_pe_add_3d.1} parent=1 // pred_region
      _
    $region5: #{_pe_add_3d.1} parent=1 // pred_fallthru
      _
    // Predicated region
    $region6: #{_pe_add_3d.1} parent=1 // pred_check
      _
    $region7: #{_pe_add_3d.1} parent=1 // pred_check_branch
      %11 = sbr.rel (0) target = $region9
    $region8: #{_pe_add_3d.1} parent=1 // pred_region
      _
    $region9: #{_pe_add_3d.1} parent=1 // pred_fallthru
      _
    %v12 = vld [vmem:[%s0] sm:$0x3]
    %v13 = vld [vmem:[%s0 + $0x2] sm:$0x3]
    %v14 = vld [vmem:[%s0 + $0x4] sm:$0x3]
    %v15 = vld [vmem:[%s0 + $0x6] sm:$0x3]
    %v16 = vld [vmem:[%s0 + $0x8] sm:$0x3]
    %v17 = vld [vmem:[%s0 + $0xa] sm:$0x3]
    %v18 = vld [vmem:[%s0 + $0xc] sm:$0x3]
    %v19 = vld [vmem:[%s0 + $0xe] sm:$0x3]
    %v20 = vld [vmem:[%s1] sm:$0xff]
    %v22 = vcombine.high %v20, %v20
    %v24 = vunpack.c.l.s4 1966171168
    %v25 = vunpack.c.0.s8 %v24
    %v26 = vlaneseq
    %v27 = vshrl.u32 %v26, 7
    %v28 = vsub.s32 %v25, %v27
    %v29 = vrot.slane %v20, %v28
    %v31 = vunpack.c.l.s4 1966171168
    %v32 = vunpack.c.0.s8 %v31
    %v33 = vlaneseq
    %v34 = vshrl.u32 %v33, 7
    %v35 = vsub.s32 %v32, %v34
    %v36 = vrot.slane %v22, %v35
    %v37 = vcombine.high %v29, %v29
    %v38 = vcombine.high %v36, %v36
    %v40 = vunpack.c.l.s4 1966171168
    %v41 = vunpack.c.0.s8 %v40
    %v42 = vlaneseq
    %v43 = vshrl.u32 %v42, 7
    %v44 = vsub.s32 %v41, %v43
    %v45 = vrot.slane %v29, %v44
    %v47 = vunpack.c.l.s4 1966171168
    %v48 = vunpack.c.0.s8 %v47
    %v49 = vlaneseq
    %v50 = vshrl.u32 %v49, 7
    %v51 = vsub.s32 %v48, %v50
    %v52 = vrot.slane %v36, %v51
    %v54 = vunpack.c.l.s4 1966171168
    %v55 = vunpack.c.0.s8 %v54
    %v56 = vlaneseq
    %v57 = vshrl.u32 %v56, 7
    %v58 = vsub.s32 %v55, %v57
    %v59 = vrot.slane %v37, %v58
    %v61 = vunpack.c.l.s4 1966171168
    %v62 = vunpack.c.0.s8 %v61
    %v63 = vlaneseq
    %v64 = vshrl.u32 %v63, 7
    %v65 = vsub.s32 %v62, %v64
    %v66 = vrot.slane %v38, %v65
    %v67 = vcombine.high %v45, %v45
    %v68 = vcombine.high %v52, %v52
    %v69 = vcombine.high %v59, %v59
    %v70 = vcombine.high %v66, %v66
    %v71 = vlaneseq
    %v72 = vshrl.u32 %v71, 7
    %v73 = vsub.s32 0, %v72
    %v74 = vrot.slane %v45, %v73
    %v75 = vlaneseq
    %v76 = vshrl.u32 %v75, 7
    %v77 = vsub.s32 0, %v76
    %v78 = vrot.slane %v59, %v77
    %v79 = vlaneseq
    %v80 = vshrl.u32 %v79, 7
    %v81 = vsub.s32 0, %v80
    %v82 = vrot.slane %v67, %v81
    %v83 = vlaneseq
    %v84 = vshrl.u32 %v83, 7
    %v85 = vsub.s32 0, %v84
    %v86 = vrot.slane %v69, %v85
    %v87 = vlaneseq
    %v88 = vshrl.u32 %v87, 7
    %v89 = vsub.s32 0, %v88
    %v90 = vrot.slane %v52, %v89
    %v91 = vlaneseq
    %v92 = vshrl.u32 %v91, 7
    %v93 = vsub.s32 0, %v92
    %v94 = vrot.slane %v66, %v93
    %v95 = vlaneseq
    %v96 = vshrl.u32 %v95, 7
    %v97 = vsub.s32 0, %v96
    %v98 = vrot.slane %v68, %v97
    %v99 = vlaneseq
    %v100 = vshrl.u32 %v99, 7
    %v101 = vsub.s32 0, %v100
    %v102 = vrot.slane %v70, %v101
    %v111 = vadd.f32 %v12, %v74
    %v112 = vadd.f32 %v13, %v78
    %v113 = vadd.f32 %v14, %v82
    %v114 = vadd.f32 %v15, %v86
    %v115 = vadd.f32 %v16, %v90
    %v116 = vadd.f32 %v17, %v94
    %v117 = vadd.f32 %v18, %v98
    %v118 = vadd.f32 %v19, %v102
    %vm119 = vcmask 254976
    %120 = vst.msk [vmem:[#allocation2] sm:$0x3] %vm119, %v111
    %121 = vst.msk [vmem:[#allocation2 + $0x2] sm:$0x3] %vm119, %v112
    %122 = vst.msk [vmem:[#allocation2 + $0x4] sm:$0x3] %vm119, %v113
    %123 = vst.msk [vmem:[#allocation2 + $0x6] sm:$0x3] %vm119, %v114
    %124 = vst.msk [vmem:[#allocation2 + $0x8] sm:$0x3] %vm119, %v115
    %125 = vst.msk [vmem:[#allocation2 + $0xa] sm:$0x3] %vm119, %v116
    %126 = vst.msk [vmem:[#allocation2 + $0xc] sm:$0x3] %vm119, %v117
    %127 = vst.msk [vmem:[#allocation2 + $0xe] sm:$0x3] %vm119, %v118
    // Predicated region
    $region10: #{_pe_add_3d.1} parent=1 // pred_check
      _
    $region11: #{_pe_add_3d.1} parent=1 // pred_check_branch
      %129 = sbr.rel (0) target = $region13
    $region12: #{_pe_add_3d.1} parent=1 // pred_region
      %s131 = ssub.s32 256, 256
      %132 = vsyncadd [#allocation3], %s131
      %s133 = sshll.u32 [#allocation2], 4
      %s134 = int_to_ptr.vmem [resolvable:$true] %s133
      %139 = dma.vmem_to_hbm [thread:$0]  %s134, 256, %s2, [#allocation3], 32, 32, 2
    $region13: #{_pe_add_3d.1} parent=1 // pred_fallthru
      _
    // Predicated region
    $region14: #{_pe_add_3d.1} parent=1 // pred_check
      _
    $region15: #{_pe_add_3d.1} parent=1 // pred_check_branch
      %141 = sbr.rel (0) target = $region17
    $region16: #{_pe_add_3d.1} parent=1 // pred_region
      %142 = dma.done [#allocation3], 256
    $region17: #{_pe_add_3d.1} parent=1 // pred_fallthru
      _
    %143 = vsyncpa [#allocation3], 1

</llo_original>
